<compile_context>
chip_gen: v7x
topology: tpu7x:2x2x1
jax: 0.10.0
libtpu: 0.0.40
codegen_flags: <defaults>
</compile_context>

<pallas_src>
import functools
from itertools import product

import numpy as np
import jax
import jax.numpy as jnp
from jax.experimental import pallas as pl
from jax.experimental.pallas import tpu as pltpu


def _round_up(x, m):
    return ((x + m - 1) // m) * m


_LOG_VALID = float(np.log(np.float32(1.0) + np.float32(1e-9)))   # ~0.0
_LOG_INVALID = float(np.log(np.float32(1e-9)))                   # ~-20.72


# ---------------------------------------------------------------------------
# Pallas kernel: boolean action mask + 2-layer tanh MLP + masked softmax head.
# ---------------------------------------------------------------------------
def _policy_kernel(states_ref, asp_ref,
                   w1_ref, b1_ref, w2_ref, b2_ref, w3_ref, b3_ref,
                   out_ref, *, num_sessions, num_alloc, num_actions,
                   decision_epoch, matmul_dtype):
    s = states_ref[...]                                    # (TB, D) f32
    D = s.shape[1]
    wait = s[:, num_sessions:num_sessions + num_alloc]     # (TB, K) lane slice
    t = s[:, D - 1:D]                                      # (TB, 1) lane slice

    # ---- boolean action mask (vectorized get_action_mask) -----------------
    # d = action[:, k] - waitlist[:, k]; values are small integer-valued f32,
    # so the subtraction is exact: le <=> d <= 0, eq <=> d == 0.  One implicit
    # broadcast per k (JAX does not CSE broadcast_in_dim).
    le_all = None
    eq_all = None
    for k in range(num_alloc):                             # K is tiny, unrolled
        d = asp_ref[k:k + 1, :] - wait[:, k:k + 1]         # (TB, A_pad)
        le = d <= 0.0
        eq = d == 0.0
        le_all = le if le_all is None else jnp.logical_and(le_all, le)
        eq_all = eq if eq_all is None else jnp.logical_and(eq_all, eq)
    # Exact float equality on the epoch mirrors the PyTorch reference (time
    # steps are integer-valued).
    pre_epoch = t < jnp.float32(decision_epoch)            # (TB, 1)
    at_epoch = t == jnp.float32(decision_epoch)
    valid = jnp.logical_or(jnp.logical_and(le_all, pre_epoch),
                           jnp.logical_and(eq_all, at_epoch))  # (TB, A_pad)

    # ---- MLP trunk (tanh activations) --------------------------------------
    def affine(x, w_ref, b_ref):
        return jnp.dot(x.astype(matmul_dtype), w_ref[...].astype(matmul_dtype),
                       preferred_element_type=jnp.float32) + b_ref[...]

    h = jnp.tanh(affine(s, w1_ref, b1_ref))
    h = jnp.tanh(affine(h, w2_ref, b2_ref))

    # ---- action head + masked softmax --------------------------------------
    logits = affine(h, w3_ref, b3_ref)
    # log(mask + 1e-9) with mask in {0,1} is a select between two constants.
    logits = logits + jnp.where(valid, jnp.float32(_LOG_VALID),
                                jnp.float32(_LOG_INVALID))

    m = jnp.max(logits, axis=1, keepdims=True)
    e = jnp.exp(logits - m)
    denom = jnp.sum(e, axis=1, keepdims=True)
    probs = e * pl.reciprocal(denom, approx=False)
    # Narrow (lane-masked) store: write only the A real action columns instead
    # of a 128-lane padded slab -> ~14x fewer output HBM bytes for A=9.
    out_ref[...] = probs[:, :num_actions]


# ---------------------------------------------------------------------------
# One-time preparation: pad all call-invariant constants (hoisted out of the
# per-call wrapper).
# ---------------------------------------------------------------------------
def prepare_discrete_policy(action_space, params, *, num_sessions,
                            decision_epoch, matmul_dtype=jnp.float32):
    (w1, b1), (w2, b2), (w3, b3) = params
    A, K = action_space.shape
    A_pad = _round_up(A, 128)

    asp_p = jnp.pad(jnp.asarray(action_space, jnp.float32).T,
                    ((0, 0), (0, A_pad - A)))                       # (K, A_pad)
    w3_p = jnp.pad(w3, ((0, 0), (0, A_pad - A)))                    # zero pad
    # -1e30 bias kills the padded logit lanes before the softmax.
    b3_p = jnp.pad(b3, ((0, 0), (0, A_pad - A)),
                   constant_values=jnp.float32(-1e30))

    return dict(asp_p=asp_p, w1=w1, b1=b1, w2=w2, b2=b2, w3_p=w3_p, b3_p=b3_p,
                num_actions=int(A), num_alloc=int(K),
                num_sessions=int(num_sessions),
                decision_epoch=float(decision_epoch),
                matmul_dtype=matmul_dtype)


# ---------------------------------------------------------------------------
# Forward wrapper: batch-tiled pallas_call.
# ---------------------------------------------------------------------------
def discrete_policy_forward(states, prepared, *, block_b=2048):
    B, D = states.shape
    K = prepared["num_alloc"]
    A = prepared["num_actions"]
    A_pad = prepared["asp_p"].shape[1]
    if K != D - prepared["num_sessions"] - 1:
        raise ValueError("action_space width does not match the waitlist slice "
                         "states[:, num_sessions:-1]")

    w1, b1 = prepared["w1"], prepared["b1"]
    w2, b2 = prepared["w2"], prepared["b2"]
    w3_p, b3_p = prepared["w3_p"], prepared["b3_p"]
    H1, H2 = w1.shape[1], w2.shape[1]

    # Batch tile: multiple of 8 (sublane); >= 2 grid blocks whenever B > 8 so
    # the "parallel" axis shards across both v7x TensorCores; capped at 4096
    # rows to stay inside v7x's 64 MiB VMEM with the explicit limit below.
    block_b = max(8, (block_b // 8) * 8)
    TB = min(block_b, 4096, max(8, _round_up(-(-B // 2), 8)))
    B_pad = _round_up(B, TB)
    n_blocks = B_pad // TB

    states_p = states if B_pad == B else jnp.pad(states,
                                                 ((0, B_pad - B), (0, 0)))

    kernel = functools.partial(
        _policy_kernel,
        num_sessions=prepared["num_sessions"],
        num_alloc=K,
        num_actions=A,
        decision_epoch=prepared["decision_epoch"],
        matmul_dtype=prepared["matmul_dtype"])

    def resident(shape):            # stays in VMEM across all grid steps
        return pl.BlockSpec(shape, lambda i: (0, 0))

    def batched(shape):             # marches along the batch axis
        return pl.BlockSpec(shape, lambda i: (i, 0))

    flops = 2 * B_pad * (D * H1 + H1 * H2 + H2 * A_pad)
    transcendentals = B_pad * (H1 + H2 + A_pad)
    bytes_accessed = 4 * (states_p.size + prepared["asp_p"].size +
                          w1.size + b1.size + w2.size + b2.size +
                          w3_p.size + b3_p.size + B_pad * A)

    out = pl.pallas_call(
        kernel,
        out_shape=jax.ShapeDtypeStruct((B_pad, A), jnp.float32),
        grid=(n_blocks,),
        in_specs=[batched((TB, D)),
                  resident(prepared["asp_p"].shape),
                  resident(w1.shape), resident(b1.shape),
                  resident(w2.shape), resident(b2.shape),
                  resident(w3_p.shape), resident(b3_p.shape)],
        out_specs=batched((TB, A)),
        compiler_params=pltpu.CompilerParams(
            dimension_semantics=("parallel",),
            vmem_limit_bytes=48 * 1024 * 1024),
        cost_estimate=pl.CostEstimate(flops=flops,
                                      transcendentals=transcendentals,
                                      bytes_accessed=bytes_accessed),
    )(states_p, prepared["asp_p"], w1, b1, w2, b2, w3_p, b3_p)

    return out[:B]


# ---------------------------------------------------------------------------
# Pure-JAX reference (mirrors the PyTorch forward exactly).
# ---------------------------------------------------------------------------
def reference_forward(states, action_space, params, *, num_sessions,
                      decision_epoch):
    wait = states[:, num_sessions:-1]                      # (B, K)
    t = states[:, -1:]                                     # (B, 1)
    le = jnp.all(action_space[None, :, :] <= wait[:, None, :], axis=-1)
    eq = jnp.all(action_space[None, :, :] == wait[:, None, :], axis=-1)
    mask = jnp.where((le & (t < decision_epoch)) | (eq & (t == decision_epoch)),
                     1.0, 0.0).astype(jnp.float32)
    x = states
    for w, b in params[:-1]:
        x = jnp.tanh(x @ w + b)
    w3, b3 = params[-1]
    logits = x @ w3 + b3 + jnp.log(mask + 1e-9)
    return jax.nn.softmax(logits, axis=1)


# ---------------------------------------------------------------------------
# Deterministic parameter init (nn.Linear-style uniform).
# ---------------------------------------------------------------------------
def init_linear(key, fan_in, fan_out):
    k_w, k_b = jax.random.split(key)
    bound = 1.0 / np.sqrt(fan_in)
    w = jax.random.uniform(k_w, (fan_in, fan_out), jnp.float32, -bound, bound)
    b = jax.random.uniform(k_b, (1, fan_out), jnp.float32, -bound, bound)
    return w, b


def make_inputs(key, batch, num_sessions, max_alloc, decision_epoch):
    k_sess, k_wait, k_time = jax.random.split(key, 3)
    sess = jax.random.normal(k_sess, (batch, num_sessions), jnp.float32)
    wait = jax.random.randint(k_wait, (batch, len(max_alloc)), 0,
                              max_alloc[0] + 1).astype(jnp.float32)
    time = jax.random.randint(k_time, (batch, 1), 0,
                              decision_epoch + 1).astype(jnp.float32)
    return jnp.concatenate([sess, wait, time], axis=1)


if __name__ == "__main__":
    # Synthetic env: 2 sessions, maximum_allocation = [2, 2] -> 9 actions,
    # state_dim = 4 (waitlist len 2), input dim D = state_dim + 1 = 5.
    NUM_SESSIONS = 2
    MAX_ALLOC = [2, 2]
    DECISION_EPOCH = 4
    STATE_DIM = 4
    D_IN = STATE_DIM + 1
    HIDDEN = (32, 32)

    action_space = jnp.asarray(
        list(product(*[range(m + 1) for m in MAX_ALLOC])), dtype=jnp.float32)
    A = action_space.shape[0]                              # 9

    key = jax.random.PRNGKey(0)
    k_in1, k_in2, k1, k2, k3 = jax.random.split(key, 5)

    params = [
        init_linear(k1, D_IN, HIDDEN[0]),
        init_linear(k2, HIDDEN[0], HIDDEN[1]),
        init_linear(k3, HIDDEN[1], A),
    ]

    # Constants are padded once and reused across calls.
    prepared = prepare_discrete_policy(action_space, params,
                                       num_sessions=NUM_SESSIONS,
                                       decision_epoch=DECISION_EPOCH)

    # Check both the exact-fit path (B multiple of 8) and the padded path.
    for kb, B in ((k_in1, 8), (k_in2, 50)):
        states = make_inputs(kb, B, NUM_SESSIONS, MAX_ALLOC, DECISION_EPOCH)

        out = discrete_policy_forward(states, prepared)
        out = jax.block_until_ready(out)

        ref = reference_forward(states, action_space, params,
                                num_sessions=NUM_SESSIONS,
                                decision_epoch=DECISION_EPOCH)

        np.testing.assert_allclose(np.asarray(out), np.asarray(ref),
                                   rtol=1e-4, atol=2e-5)
        # rows sum to 1
        np.testing.assert_allclose(np.asarray(out).sum(axis=1),
                                   np.ones(B), rtol=1e-5, atol=1e-5)

    # TODO(synk): select_action (multinomial sampling), get_log_prob gather,
    # and Fvp_fim (autograd-based Fisher-vector product) are host-side /
    # autograd utilities, not part of the forward hot path.
    print("KERNEL_OK")
</pallas_src>

<mosaic_0001>
module attributes {stable_mosaic.version = 11 : i64} {
  func.func @_policy_kernel(%arg0: i32, %arg1: memref<8x5xf32, #tpu.memory_space<vmem>>, %arg2: memref<2x128xf32, #tpu.memory_space<vmem>>, %arg3: memref<5x32xf32, #tpu.memory_space<vmem>>, %arg4: memref<1x32xf32, #tpu.memory_space<vmem>>, %arg5: memref<32x32xf32, #tpu.memory_space<vmem>>, %arg6: memref<1x32xf32, #tpu.memory_space<vmem>>, %arg7: memref<32x128xf32, #tpu.memory_space<vmem>>, %arg8: memref<1x128xf32, #tpu.memory_space<vmem>>, %arg9: memref<8x9xf32, #tpu.memory_space<vmem>>) attributes {dimension_semantics = [#tpu.dimension_semantics<parallel>], iteration_bounds = array<i64: 1>, scalar_prefetch = 0 : i64, scratch_operands = 0 : i64, tpu.core_type = #tpu.core_type<tc>, window_params = [{transform_indices = @transform_0, window_bounds = array<i64: 8, 5>}, {pipeline_mode = #tpu.pipeline_mode<synchronous>, transform_indices = @transform_1, window_bounds = array<i64: 2, 128>}, {pipeline_mode = #tpu.pipeline_mode<synchronous>, transform_indices = @transform_2, window_bounds = array<i64: 5, 32>}, {pipeline_mode = #tpu.pipeline_mode<synchronous>, transform_indices = @transform_3, window_bounds = array<i64: 1, 32>}, {pipeline_mode = #tpu.pipeline_mode<synchronous>, transform_indices = @transform_4, window_bounds = array<i64: 32, 32>}, {pipeline_mode = #tpu.pipeline_mode<synchronous>, transform_indices = @transform_5, window_bounds = array<i64: 1, 32>}, {pipeline_mode = #tpu.pipeline_mode<synchronous>, transform_indices = @transform_6, window_bounds = array<i64: 32, 128>}, {pipeline_mode = #tpu.pipeline_mode<synchronous>, transform_indices = @transform_7, window_bounds = array<i64: 1, 128>}, {transform_indices = @transform_8, window_bounds = array<i64: 8, 9>}]} {
    %c0 = arith.constant 0 : index
    %c0_0 = arith.constant 0 : index
    %0 = vector.load %arg1[%c0, %c0_0] : memref<8x5xf32, #tpu.memory_space<vmem>>, vector<8x5xf32>
    %1 = vector.extract_strided_slice %0 {offsets = [0, 2], sizes = [8, 2], strides = [1, 1]} : vector<8x5xf32> to vector<8x2xf32>
    %2 = vector.extract_strided_slice %0 {offsets = [0, 4], sizes = [8, 1], strides = [1, 1]} : vector<8x5xf32> to vector<8x1xf32>
    %c0_1 = arith.constant 0 : index
    %c0_2 = arith.constant 0 : index
    %3 = vector.load %arg2[%c0_1, %c0_2] : memref<2x128xf32, #tpu.memory_space<vmem>>, vector<1x128xf32>
    %4 = vector.extract_strided_slice %1 {offsets = [0, 0], sizes = [8, 1], strides = [1, 1]} : vector<8x2xf32> to vector<8x1xf32>
    %5 = vector.broadcast %3 : vector<1x128xf32> to vector<8x128xf32>
    %6 = vector.broadcast %4 : vector<8x1xf32> to vector<8x128xf32>
    %7 = arith.subf %5, %6 : vector<8x128xf32>
    %cst = arith.constant 0.000000e+00 : f32
    %8 = vector.broadcast %cst : f32 to vector<8x128xf32>
    %9 = arith.cmpf ole, %7, %8 : vector<8x128xf32>
    %cst_3 = arith.constant 0.000000e+00 : f32
    %10 = vector.broadcast %cst_3 : f32 to vector<8x128xf32>
    %11 = arith.cmpf oeq, %7, %10 : vector<8x128xf32>
    %c1 = arith.constant 1 : index
    %c0_4 = arith.constant 0 : index
    %12 = vector.load %arg2[%c1, %c0_4] : memref<2x128xf32, #tpu.memory_space<vmem>>, vector<1x128xf32>
    %13 = vector.extract_strided_slice %1 {offsets = [0, 1], sizes = [8, 1], strides = [1, 1]} : vector<8x2xf32> to vector<8x1xf32>
    %14 = vector.broadcast %12 : vector<1x128xf32> to vector<8x128xf32>
    %15 = vector.broadcast %13 : vector<8x1xf32> to vector<8x128xf32>
    %16 = arith.subf %14, %15 : vector<8x128xf32>
    %cst_5 = arith.constant 0.000000e+00 : f32
    %17 = vector.broadcast %cst_5 : f32 to vector<8x128xf32>
    %18 = arith.cmpf ole, %16, %17 : vector<8x128xf32>
    %cst_6 = arith.constant 0.000000e+00 : f32
    %19 = vector.broadcast %cst_6 : f32 to vector<8x128xf32>
    %20 = arith.cmpf oeq, %16, %19 : vector<8x128xf32>
    %21 = arith.andi %9, %18 : vector<8x128xi1>
    %22 = arith.andi %11, %20 : vector<8x128xi1>
    %cst_7 = arith.constant 4.000000e+00 : f32
    %23 = vector.broadcast %cst_7 : f32 to vector<8x1xf32>
    %24 = arith.cmpf olt, %2, %23 : vector<8x1xf32>
    %cst_8 = arith.constant 4.000000e+00 : f32
    %25 = vector.broadcast %cst_8 : f32 to vector<8x1xf32>
    %26 = arith.cmpf oeq, %2, %25 : vector<8x1xf32>
    %27 = vector.broadcast %24 : vector<8x1xi1> to vector<8x128xi1>
    %28 = arith.andi %21, %27 : vector<8x128xi1>
    %29 = vector.broadcast %26 : vector<8x1xi1> to vector<8x128xi1>
    %30 = arith.andi %22, %29 : vector<8x128xi1>
    %31 = arith.ori %28, %30 : vector<8x128xi1>
    %c0_9 = arith.constant 0 : index
    %c0_10 = arith.constant 0 : index
    %32 = vector.load %arg3[%c0_9, %c0_10] : memref<5x32xf32, #tpu.memory_space<vmem>>, vector<5x32xf32>
    %cst_11 = arith.constant dense<0.000000e+00> : vector<8x32xf32>
    %33 = tpu.matmul %0, %32, %cst_11 {dimension_numbers = #tpu.dot_dimension_numbers<[1], [0], [0], [1], [0, 0, 1, 1], [], []>} : vector<8x5xf32>, vector<5x32xf32>, vector<8x32xf32> -> vector<8x32xf32>
    %c0_12 = arith.constant 0 : index
    %c0_13 = arith.constant 0 : index
    %34 = vector.load %arg4[%c0_12, %c0_13] : memref<1x32xf32, #tpu.memory_space<vmem>>, vector<1x32xf32>
    %35 = vector.broadcast %34 : vector<1x32xf32> to vector<8x32xf32>
    %36 = arith.addf %33, %35 : vector<8x32xf32>
    %37 = math.tanh %36 : vector<8x32xf32>
    %c0_14 = arith.constant 0 : index
    %c0_15 = arith.constant 0 : index
    %38 = vector.load %arg5[%c0_14, %c0_15] : memref<32x32xf32, #tpu.memory_space<vmem>>, vector<32x32xf32>
    %cst_16 = arith.constant dense<0.000000e+00> : vector<8x32xf32>
    %39 = tpu.matmul %37, %38, %cst_16 {dimension_numbers = #tpu.dot_dimension_numbers<[1], [0], [0], [1], [0, 0, 1, 1], [], []>} : vector<8x32xf32>, vector<32x32xf32>, vector<8x32xf32> -> vector<8x32xf32>
    %c0_17 = arith.constant 0 : index
    %c0_18 = arith.constant 0 : index
    %40 = vector.load %arg6[%c0_17, %c0_18] : memref<1x32xf32, #tpu.memory_space<vmem>>, vector<1x32xf32>
    %41 = vector.broadcast %40 : vector<1x32xf32> to vector<8x32xf32>
    %42 = arith.addf %39, %41 : vector<8x32xf32>
    %43 = math.tanh %42 : vector<8x32xf32>
    %c0_19 = arith.constant 0 : index
    %c0_20 = arith.constant 0 : index
    %44 = vector.load %arg7[%c0_19, %c0_20] : memref<32x128xf32, #tpu.memory_space<vmem>>, vector<32x128xf32>
    %cst_21 = arith.constant dense<0.000000e+00> : vector<8x128xf32>
    %45 = tpu.matmul %43, %44, %cst_21 {dimension_numbers = #tpu.dot_dimension_numbers<[1], [0], [0], [1], [0, 0, 1, 1], [], []>} : vector<8x32xf32>, vector<32x128xf32>, vector<8x128xf32> -> vector<8x128xf32>
    %c0_22 = arith.constant 0 : index
    %c0_23 = arith.constant 0 : index
    %46 = vector.load %arg8[%c0_22, %c0_23] : memref<1x128xf32, #tpu.memory_space<vmem>>, vector<1x128xf32>
    %47 = vector.broadcast %46 : vector<1x128xf32> to vector<8x128xf32>
    %48 = arith.addf %45, %47 : vector<8x128xf32>
    %cst_24 = arith.constant 0.000000e+00 : f32
    %cst_25 = arith.constant -20.7232666 : f32
    %49 = vector.broadcast %cst_24 : f32 to vector<8x128xf32>
    %50 = vector.broadcast %cst_25 : f32 to vector<8x128xf32>
    %51 = arith.select %31, %49, %50 : vector<8x128xi1>, vector<8x128xf32>
    %52 = arith.addf %48, %51 : vector<8x128xf32>
    %cst_26 = arith.constant dense<0xFF800000> : vector<8xf32>
    %53 = vector.multi_reduction <maximumf>, %52, %cst_26 [1] : vector<8x128xf32> to vector<8xf32>
    %54 = vector.shape_cast %53 : vector<8xf32> to vector<8x1xf32>
    %55 = vector.broadcast %54 : vector<8x1xf32> to vector<8x128xf32>
    %56 = arith.subf %52, %55 : vector<8x128xf32>
    %57 = math.exp %56 : vector<8x128xf32>
    %cst_27 = arith.constant dense<0.000000e+00> : vector<8xf32>
    %58 = vector.multi_reduction <add>, %57, %cst_27 [1] : vector<8x128xf32> to vector<8xf32>
    %59 = vector.shape_cast %58 : vector<8xf32> to vector<8x1xf32>
    %60 = tpu.reciprocal %59 : vector<8x1xf32> -> vector<8x1xf32>
    %61 = vector.broadcast %60 : vector<8x1xf32> to vector<8x128xf32>
    %62 = arith.mulf %57, %61 : vector<8x128xf32>
    %63 = vector.extract_strided_slice %62 {offsets = [0, 0], sizes = [8, 9], strides = [1, 1]} : vector<8x128xf32> to vector<8x9xf32>
    %c0_28 = arith.constant 0 : index
    %c0_29 = arith.constant 0 : index
    %64 = vector.load %arg9[%c0_28, %c0_29] : memref<8x9xf32, #tpu.memory_space<vmem>>, vector<8x9xf32>
    tpu.vector_store %arg9[%c0_28, %c0_29], %63 {strides = array<i32>} : memref<8x9xf32, #tpu.memory_space<vmem>>, vector<8x9xf32>,
    return
  }
  func.func @transform_0(%arg0: i32) -> (i32, i32) {
    %c0_i32 = arith.constant 0 : i32
    %c0_i32_0 = arith.constant 0 : i32
    return %arg0, %c0_i32 : i32, i32
  }
  func.func @transform_1(%arg0: i32) -> (i32, i32) {
    %c0_i32 = arith.constant 0 : i32
    %c0_i32_0 = arith.constant 0 : i32
    %c0_i32_1 = arith.constant 0 : i32
    return %c0_i32, %c0_i32_0 : i32, i32
  }
  func.func @transform_2(%arg0: i32) -> (i32, i32) {
    %c0_i32 = arith.constant 0 : i32
    %c0_i32_0 = arith.constant 0 : i32
    %c0_i32_1 = arith.constant 0 : i32
    return %c0_i32, %c0_i32_0 : i32, i32
  }
  func.func @transform_3(%arg0: i32) -> (i32, i32) {
    %c0_i32 = arith.constant 0 : i32
    %c0_i32_0 = arith.constant 0 : i32
    %c0_i32_1 = arith.constant 0 : i32
    return %c0_i32, %c0_i32_0 : i32, i32
  }
  func.func @transform_4(%arg0: i32) -> (i32, i32) {
    %c0_i32 = arith.constant 0 : i32
    %c0_i32_0 = arith.constant 0 : i32
    %c0_i32_1 = arith.constant 0 : i32
    return %c0_i32, %c0_i32_0 : i32, i32
  }
  func.func @transform_5(%arg0: i32) -> (i32, i32) {
    %c0_i32 = arith.constant 0 : i32
    %c0_i32_0 = arith.constant 0 : i32
    %c0_i32_1 = arith.constant 0 : i32
    return %c0_i32, %c0_i32_0 : i32, i32
  }
  func.func @transform_6(%arg0: i32) -> (i32, i32) {
    %c0_i32 = arith.constant 0 : i32
    %c0_i32_0 = arith.constant 0 : i32
    %c0_i32_1 = arith.constant 0 : i32
    return %c0_i32, %c0_i32_0 : i32, i32
  }
  func.func @transform_7(%arg0: i32) -> (i32, i32) {
    %c0_i32 = arith.constant 0 : i32
    %c0_i32_0 = arith.constant 0 : i32
    %c0_i32_1 = arith.constant 0 : i32
    return %c0_i32, %c0_i32_0 : i32, i32
  }
  func.func @transform_8(%arg0: i32) -> (i32, i32) {
    %c0_i32 = arith.constant 0 : i32
    %c0_i32_0 = arith.constant 0 : i32
    return %arg0, %c0_i32 : i32, i32
  }
}

</mosaic_0001>

<llo_original>
// kernel: tpu_custom_call.1
$region0: #{tpu_custom_call.1}
  #allocation0 [shape = 'u32[]', space=smem, size = 0x4, offset = 0x4, fixed_abs, tag = 'smem constant byte address 0x4 - core index']
  #allocation1 [shape = 'u32[144,128]{1,0:T(1,128)}', space=vmem, size = 0x12000, scoped, tag = 'internal scratch']
  %s0 = inlined_call_operand.hbm [shape: f32[8,5], index: 0, kind: input, shape index: {}]
  %s1 = inlined_call_operand.vmem [shape: f32[2,128], index: 1, kind: input, shape index: {}]
  %s2 = inlined_call_operand.hbm [shape: f32[5,32], index: 2, kind: input, shape index: {}]
  %s3 = inlined_call_operand.vmem [shape: f32[1,32], index: 3, kind: input, shape index: {}]
  %s4 = inlined_call_operand.hbm [shape: f32[32,32], index: 4, kind: input, shape index: {}]
  %s5 = inlined_call_operand.vmem [shape: f32[1,32], index: 5, kind: input, shape index: {}]
  %s6 = inlined_call_operand.hbm [shape: f32[32,128], index: 6, kind: input, shape index: {}]
  %s7 = inlined_call_operand.vmem [shape: f32[1,128], index: 7, kind: input, shape index: {}]
  %s8 = inlined_call_operand.hbm [shape: f32[8,9], index: 8, kind: output, shape index: {}]
  %s9 = sld [smem:[#allocation0]]
  $region58: #{tpu_custom_call.1} parent=0
    _
  %s11 = ssub.s32 1, %s9
  %s12 = scalar_select 0, %s11, %s9
  $region1: #{tpu_custom_call.1} parent=0
    #allocation2 [shape = 'u8[4096]{0}', space=vmem, size = 0x1000, scoped, tag = 'input window, operand 0, single buffered']
    #allocation3 [shape = 's32[1]{0}', space=sflag, size = 0x4, scoped, tag = 'scoped memory for tpu_custom_call.1']
    #allocation4 [shape = 's32[1]{0}', space=sflag, size = 0x4, scoped, tag = 'scoped memory for tpu_custom_call.1']
    #allocation5 [shape = 'u8[4096]{0}', space=vmem, size = 0x1000, scoped, tag = 'input window, operand 2, single buffered']
    #allocation6 [shape = 's32[1]{0}', space=sflag, size = 0x4, scoped, tag = 'scoped memory for tpu_custom_call.1']
    #allocation7 [shape = 'u8[16384]{0}', space=vmem, size = 0x4000, scoped, tag = 'input window, operand 4, single buffered']
    #allocation8 [shape = 'u8[16384]{0}', space=vmem, size = 0x4000, scoped, tag = 'input window, operand 6, single buffered']
    #allocation9 [shape = 's32[1]{0}', space=sflag, size = 0x4, scoped, tag = 'scoped memory for tpu_custom_call.1']
    #allocation10 [shape = 'u8[4096]{0}', space=vmem, size = 0x1000, scoped, tag = 'output window, operand 0, single buffered']
    %13 = vsyncpa [#allocation3], 0
    %14 = vsyncpa [#allocation6], 0
    %15 = vsyncpa [#allocation9], 0
    %16 = vsyncpa [#allocation4], 0
    // Predicated region
    $region2: #{tpu_custom_call.1} parent=1 // pred_check
      _
    $region3: #{tpu_custom_call.1} parent=1 // pred_check_branch
      %18 = sbr.rel (0) target = $region5
    $region4: #{tpu_custom_call.1} parent=1 // pred_region
      %s20 = ssub.s32 128, 128
      %21 = vsyncadd [#allocation3], %s20
      %s23 = sshll.u32 [#allocation2], 4
      %s24 = int_to_ptr.vmem [resolvable:$true] %s23
      %26 = dma.hbm_to_vmem [thread:$0]  %s0, 128, %s24, [#allocation3]
    $region5: #{tpu_custom_call.1} parent=1 // pred_fallthru
      _
    // Predicated region
    $region6: #{tpu_custom_call.1} parent=1 // pred_check
      _
    $region7: #{tpu_custom_call.1} parent=1 // pred_check_branch
      %28 = sbr.rel (0) target = $region9
    $region8: #{tpu_custom_call.1} parent=1 // pred_region
      _
    $region9: #{tpu_custom_call.1} parent=1 // pred_fallthru
      _
    // Predicated region
    $region10: #{tpu_custom_call.1} parent=1 // pred_check
      _
    $region11: #{tpu_custom_call.1} parent=1 // pred_check_branch
      %30 = sbr.rel (0) target = $region13
    $region12: #{tpu_custom_call.1} parent=1 // pred_region
      %s32 = ssub.s32 128, 128
      %33 = vsyncadd [#allocation6], %s32
      %s35 = sshll.u32 [#allocation5], 4
      %s36 = int_to_ptr.vmem [resolvable:$true] %s35
      %38 = dma.hbm_to_vmem [thread:$0]  %s2, 128, %s36, [#allocation6]
    $region13: #{tpu_custom_call.1} parent=1 // pred_fallthru
      _
    // Predicated region
    $region14: #{tpu_custom_call.1} parent=1 // pred_check
      _
    $region15: #{tpu_custom_call.1} parent=1 // pred_check_branch
      %40 = sbr.rel (0) target = $region17
    $region16: #{tpu_custom_call.1} parent=1 // pred_region
      _
    $region17: #{tpu_custom_call.1} parent=1 // pred_fallthru
      _
    // Predicated region
    $region18: #{tpu_custom_call.1} parent=1 // pred_check
      _
    $region19: #{tpu_custom_call.1} parent=1 // pred_check_branch
      %42 = sbr.rel (0) target = $region21
    $region20: #{tpu_custom_call.1} parent=1 // pred_region
      %s44 = ssub.s32 512, 512
      %45 = vsyncadd [#allocation6], %s44
      %s46 = sshll.u32 [#allocation7], 4
      %s47 = int_to_ptr.vmem [resolvable:$true] %s46
      %52 = dma.hbm_to_vmem [thread:$0]  %s4, 512, %s47, [#allocation6], 128, 128, 8
    $region21: #{tpu_custom_call.1} parent=1 // pred_fallthru
      _
    // Predicated region
    $region22: #{tpu_custom_call.1} parent=1 // pred_check
      _
    $region23: #{tpu_custom_call.1} parent=1 // pred_check_branch
      %54 = sbr.rel (0) target = $region25
    $region24: #{tpu_custom_call.1} parent=1 // pred_region
      _
    $region25: #{tpu_custom_call.1} parent=1 // pred_fallthru
      _
    // Predicated region
    $region26: #{tpu_custom_call.1} parent=1 // pred_check
      _
    $region27: #{tpu_custom_call.1} parent=1 // pred_check_branch
      %56 = sbr.rel (0) target = $region29
    $region28: #{tpu_custom_call.1} parent=1 // pred_region
      %s58 = ssub.s32 512, 512
      %59 = vsyncadd [#allocation9], %s58
      %s60 = sshll.u32 [#allocation8], 4
      %s61 = int_to_ptr.vmem [resolvable:$true] %s60
      %66 = dma.hbm_to_vmem [thread:$0]  %s6, 512, %s61, [#allocation9], 128, 128, 8
    $region29: #{tpu_custom_call.1} parent=1 // pred_fallthru
      _
    // Predicated region
    $region30: #{tpu_custom_call.1} parent=1 // pred_check
      _
    $region31: #{tpu_custom_call.1} parent=1 // pred_check_branch
      %68 = sbr.rel (0) target = $region33
    $region32: #{tpu_custom_call.1} parent=1 // pred_region
      _
    $region33: #{tpu_custom_call.1} parent=1 // pred_fallthru
      _
    // Predicated region
    $region34: #{tpu_custom_call.1} parent=1 // pred_check
      _
    $region35: #{tpu_custom_call.1} parent=1 // pred_check_branch
      %70 = sbr.rel (0) target = $region37
    $region36: #{tpu_custom_call.1} parent=1 // pred_region
      %71 = dma.done [#allocation3], 128
    $region37: #{tpu_custom_call.1} parent=1 // pred_fallthru
      _
    // Predicated region
    $region38: #{tpu_custom_call.1} parent=1 // pred_check
      _
    $region39: #{tpu_custom_call.1} parent=1 // pred_check_branch
      %73 = sbr.rel (0) target = $region41
    $region40: #{tpu_custom_call.1} parent=1 // pred_region
      %74 = dma.done [#allocation6], 128
    $region41: #{tpu_custom_call.1} parent=1 // pred_fallthru
      _
    // Predicated region
    $region42: #{tpu_custom_call.1} parent=1 // pred_check
      _
    $region43: #{tpu_custom_call.1} parent=1 // pred_check_branch
      %76 = sbr.rel (0) target = $region45
    $region44: #{tpu_custom_call.1} parent=1 // pred_region
      %77 = dma.done [#allocation6], 512
    $region45: #{tpu_custom_call.1} parent=1 // pred_fallthru
      _
    // Predicated region
    $region46: #{tpu_custom_call.1} parent=1 // pred_check
      _
    $region47: #{tpu_custom_call.1} parent=1 // pred_check_branch
      %79 = sbr.rel (0) target = $region49
    $region48: #{tpu_custom_call.1} parent=1 // pred_region
      %80 = dma.done [#allocation9], 512
    $region49: #{tpu_custom_call.1} parent=1 // pred_fallthru
      _
    %v81 = vld [vmem:[#allocation2] sm:$0xff]
    %v82 = vld [vmem:[%s1] sm:$0x1]
    %v83 = vlaneseq
    %v84 = vshrl.u32 %v83, 7
    %v85 = vsub.s32 0, %v84
    %v86 = vrot.slane %v82, %v85
    %88 = vset.pattern.permute.xlu0 2
    %89 = vperm.xlu0 %88, %v81
    %v90 = vpop.permute.xlu0 %89
    %v92 = vsub.f32 %v86, %v90
    %vm93 = vcmp.le.f32.partialorder %v92, 0.0
    %vm94 = vcmp.eq.f32.partialorder %v92, 0.0
    %v95 = vld [vmem:[%s1 + $0x1] sm:$0x1]
    %v96 = vlaneseq
    %v97 = vshrl.u32 %v96, 7
    %v98 = vsub.s32 0, %v97
    %v99 = vrot.slane %v95, %v98
    %100 = vset.pattern.permute.xlu0 3
    %101 = vperm.xlu0 %100, %v81
    %v102 = vpop.permute.xlu0 %101
    %v104 = vsub.f32 %v99, %v102
    %vm105 = vcmp.le.f32.partialorder %v104, 0.0
    %vm106 = vcmp.eq.f32.partialorder %v104, 0.0
    %vm107 = vmand %vm93, %vm105
    %vm108 = vmand %vm94, %vm106
    %vm109 = vcmp.lt.f32.partialorder %v81, 4.0
    %vm110 = vcmp.eq.f32.partialorder %v81, 4.0
    %v111 = vsel %vm109, 1, 0
    %112 = vset.pattern.permute.xlu0 4
    %113 = vperm.xlu0 %112, %v111
    %v114 = vpop.permute.xlu0 %113
    %vm115 = vcmp.eq.s32.totalorder %v114, 1
    %vm116 = vmand %vm107, %vm115
    %v117 = vsel %vm110, 1, 0
    %118 = vset.pattern.permute.xlu0 4
    %119 = vperm.xlu0 %118, %v117
    %v120 = vpop.permute.xlu0 %119
    %vm121 = vcmp.eq.s32.totalorder %v120, 1
    %vm122 = vmand %vm108, %vm121
    %vm123 = vmor %vm116, %vm122
    %v124 = vld [vmem:[#allocation5] sm:$0x1f]
    %v125 = vld [vmem:[%s3] sm:$0x1]
    %v127 = vlaneseq
    %v128 = vshrl.u32 %v127, 7
    %v129 = vsub.s32 0, %v128
    %v130 = vrot.slane %v125, %v129
    %vm132 = vcmask 39936
    %v133 = vsel %vm132, %v81, 0
    %vm135 = vcmask 1044480
    %v137 = vsel %vm135, %v124, 0
    %139 = vmatprep.subr.mxu0 0.0
    %140 = vmatpush1.msra.mxu0 %v137
    %141 = vmatprep.subr.mxu0 0.0
    %142 = vmatpush1.msra.mxu0 0.0
    %143 = vmatprep.subr.mxu0 0.0
    %144 = vmatpush1.msra.mxu0 0.0
    %145 = vmatprep.subr.mxu0 0.0
    %146 = vmatpush1.msra.mxu0 0.0
    %147 = vmatprep.subr.mxu0 0.0
    %148 = vmatpush1.msra.mxu0 0.0
    %149 = vmatprep.subr.mxu0 0.0
    %150 = vmatpush1.msra.mxu0 0.0
    %151 = vmatprep.subr.mxu0 0.0
    %152 = vmatpush1.msra.mxu0 0.0
    %153 = vmatprep.subr.mxu0 0.0
    %154 = vmatpush1.msra.mxu0 0.0
    %155 = vmatprep.subr.mxu0 0.0
    %156 = vmatpush1.msra.mxu0 0.0
    %157 = vmatprep.subr.mxu0 0.0
    %158 = vmatpush1.msra.mxu0 0.0
    %159 = vmatprep.subr.mxu0 0.0
    %160 = vmatpush1.msra.mxu0 0.0
    %161 = vmatprep.subr.mxu0 0.0
    %162 = vmatpush1.msra.mxu0 0.0
    %163 = vmatprep.subr.mxu0 0.0
    %164 = vmatpush1.msra.mxu0 0.0
    %165 = vmatprep.subr.mxu0 0.0
    %166 = vmatpush1.msra.mxu0 0.0
    %167 = vmatprep.subr.mxu0 0.0
    %168 = vmatpush1.msra.mxu0 0.0
    %169 = vmatprep.subr.mxu0 0.0
    %170 = vmatpush1.msra.mxu0 0.0
    %171 = vmatprep.subr.mxu0 0.0
    %172 = vmatpush1.msra.mxu0 0.0
    %173 = vmatprep.subr.mxu0 0.0
    %174 = vmatpush1.msra.mxu0 0.0
    %175 = vmatprep.subr.mxu0 0.0
    %176 = vmatpush1.msra.mxu0 0.0
    %177 = vmatprep.subr.mxu0 0.0
    %178 = vmatpush1.msra.mxu0 0.0
    %179 = vmatprep.subr.mxu0 0.0
    %180 = vmatpush1.msra.mxu0 0.0
    %181 = vmatprep.subr.mxu0 0.0
    %182 = vmatpush1.msra.mxu0 0.0
    %183 = vmatprep.subr.mxu0 0.0
    %184 = vmatpush1.msra.mxu0 0.0
    %185 = vmatprep.subr.mxu0 0.0
    %186 = vmatpush1.msra.mxu0 0.0
    %187 = vmatprep.subr.mxu0 0.0
    %188 = vmatpush1.msra.mxu0 0.0
    %189 = vmatprep.subr.mxu0 0.0
    %190 = vmatpush1.msra.mxu0 0.0
    %191 = vmatprep.subr.mxu0 0.0
    %192 = vmatpush1.msra.mxu0 0.0
    %193 = vmatprep.subr.mxu0 0.0
    %194 = vmatpush1.msra.mxu0 0.0
    %195 = vmatprep.subr.mxu0 0.0
    %196 = vmatpush1.msra.mxu0 0.0
    %197 = vmatprep.subr.mxu0 0.0
    %198 = vmatpush1.msra.mxu0 0.0
    %199 = vmatprep.subr.mxu0 0.0
    %200 = vmatpush1.msra.mxu0 0.0
    %201 = vmatprep.subr.mxu0 0.0
    %202 = vmatpush1.msra.mxu0 0.0
    %203 = vmatprep.mubr.f32.mxu0 0.0
    %204 = vmatmul.mubr.f32.gmra.mrb[0].mxu0 %v133
    %v205 = vpop.f32.mrb[0].mxu0
    %v206 = vadd.f32 %v130, %v205
    %v207 = vpop.f32.mrb[0].mxu0
    %208 = vdwg.mxu0
    %v209 = vtanh.pop %v206
    %v210 = vld [vmem:[#allocation7] sm:$0xff]
    %v211 = vld [vmem:[#allocation7 + $0x8] sm:$0xff]
    %v212 = vld [vmem:[#allocation7 + $0x10] sm:$0xff]
    %v213 = vld [vmem:[#allocation7 + $0x18] sm:$0xff]
    %v214 = vld [vmem:[%s5] sm:$0x1]
    %v216 = vlaneseq
    %v217 = vshrl.u32 %v216, 7
    %v218 = vsub.s32 0, %v217
    %v219 = vrot.slane %v214, %v218
    %vm221 = vcmask 261120
    %v223 = vsel %vm221, %v209, 0
    %225 = vmatprep.subr.mxu0 0.0
    %226 = vmatpush1.msra.mxu0 %v210
    %227 = vmatprep.subr.mxu0 0.0
    %228 = vmatpush1.msra.mxu0 %v211
    %229 = vmatprep.subr.mxu0 0.0
    %230 = vmatpush1.msra.mxu0 %v212
    %231 = vmatprep.subr.mxu0 0.0
    %232 = vmatpush1.msra.mxu0 %v213
    %233 = vmatprep.subr.mxu0 0.0
    %234 = vmatpush1.msra.mxu0 0.0
    %235 = vmatprep.subr.mxu0 0.0
    %236 = vmatpush1.msra.mxu0 0.0
    %237 = vmatprep.subr.mxu0 0.0
    %238 = vmatpush1.msra.mxu0 0.0
    %239 = vmatprep.subr.mxu0 0.0
    %240 = vmatpush1.msra.mxu0 0.0
    %241 = vmatprep.subr.mxu0 0.0
    %242 = vmatpush1.msra.mxu0 0.0
    %243 = vmatprep.subr.mxu0 0.0
    %244 = vmatpush1.msra.mxu0 0.0
    %245 = vmatprep.subr.mxu0 0.0
    %246 = vmatpush1.msra.mxu0 0.0
    %247 = vmatprep.subr.mxu0 0.0
    %248 = vmatpush1.msra.mxu0 0.0
    %249 = vmatprep.subr.mxu0 0.0
    %250 = vmatpush1.msra.mxu0 0.0
    %251 = vmatprep.subr.mxu0 0.0
    %252 = vmatpush1.msra.mxu0 0.0
    %253 = vmatprep.subr.mxu0 0.0
    %254 = vmatpush1.msra.mxu0 0.0
    %255 = vmatprep.subr.mxu0 0.0
    %256 = vmatpush1.msra.mxu0 0.0
    %257 = vmatprep.subr.mxu0 0.0
    %258 = vmatpush1.msra.mxu0 0.0
    %259 = vmatprep.subr.mxu0 0.0
    %260 = vmatpush1.msra.mxu0 0.0
    %261 = vmatprep.subr.mxu0 0.0
    %262 = vmatpush1.msra.mxu0 0.0
    %263 = vmatprep.subr.mxu0 0.0
    %264 = vmatpush1.msra.mxu0 0.0
    %265 = vmatprep.subr.mxu0 0.0
    %266 = vmatpush1.msra.mxu0 0.0
    %267 = vmatprep.subr.mxu0 0.0
    %268 = vmatpush1.msra.mxu0 0.0
    %269 = vmatprep.subr.mxu0 0.0
    %270 = vmatpush1.msra.mxu0 0.0
    %271 = vmatprep.subr.mxu0 0.0
    %272 = vmatpush1.msra.mxu0 0.0
    %273 = vmatprep.subr.mxu0 0.0
    %274 = vmatpush1.msra.mxu0 0.0
    %275 = vmatprep.subr.mxu0 0.0
    %276 = vmatpush1.msra.mxu0 0.0
    %277 = vmatprep.subr.mxu0 0.0
    %278 = vmatpush1.msra.mxu0 0.0
    %279 = vmatprep.subr.mxu0 0.0
    %280 = vmatpush1.msra.mxu0 0.0
    %281 = vmatprep.subr.mxu0 0.0
    %282 = vmatpush1.msra.mxu0 0.0
    %283 = vmatprep.subr.mxu0 0.0
    %284 = vmatpush1.msra.mxu0 0.0
    %285 = vmatprep.subr.mxu0 0.0
    %286 = vmatpush1.msra.mxu0 0.0
    %287 = vmatprep.subr.mxu0 0.0
    %288 = vmatpush1.msra.mxu0 0.0
    %289 = vmatprep.mubr.f32.mxu0 0.0
    %290 = vmatmul.mubr.f32.gmra.mrb[0].mxu0 %v223
    %v291 = vpop.f32.mrb[0].mxu0
    %v292 = vadd.f32 %v219, %v291
    %v293 = vpop.f32.mrb[0].mxu0
    %294 = vdwg.mxu0
    %v295 = vtanh.pop %v292
    %v296 = vld [vmem:[#allocation8] sm:$0xff]
    %v297 = vld [vmem:[#allocation8 + $0x8] sm:$0xff]
    %v298 = vld [vmem:[#allocation8 + $0x10] sm:$0xff]
    %v299 = vld [vmem:[#allocation8 + $0x18] sm:$0xff]
    %v300 = vld [vmem:[%s7] sm:$0x1]
    %v302 = vlaneseq
    %v303 = vshrl.u32 %v302, 7
    %v304 = vsub.s32 0, %v303
    %v305 = vrot.slane %v300, %v304
    %v308 = vsel %vm221, %v295, 0
    %310 = vmatprep.subr.mxu0 0.0
    %311 = vmatpush1.msra.mxu0 %v296
    %312 = vmatprep.subr.mxu0 0.0
    %313 = vmatpush1.msra.mxu0 %v297
    %314 = vmatprep.subr.mxu0 0.0
    %315 = vmatpush1.msra.mxu0 %v298
    %316 = vmatprep.subr.mxu0 0.0
    %317 = vmatpush1.msra.mxu0 %v299
    %318 = vmatprep.subr.mxu0 0.0
    %319 = vmatpush1.msra.mxu0 0.0
    %320 = vmatprep.subr.mxu0 0.0
    %321 = vmatpush1.msra.mxu0 0.0
    %322 = vmatprep.subr.mxu0 0.0
    %323 = vmatpush1.msra.mxu0 0.0
    %324 = vmatprep.subr.mxu0 0.0
    %325 = vmatpush1.msra.mxu0 0.0
    %326 = vmatprep.subr.mxu0 0.0
    %327 = vmatpush1.msra.mxu0 0.0
    %328 = vmatprep.subr.mxu0 0.0
    %329 = vmatpush1.msra.mxu0 0.0
    %330 = vmatprep.subr.mxu0 0.0
    %331 = vmatpush1.msra.mxu0 0.0
    %332 = vmatprep.subr.mxu0 0.0
    %333 = vmatpush1.msra.mxu0 0.0
    %334 = vmatprep.subr.mxu0 0.0
    %335 = vmatpush1.msra.mxu0 0.0
    %336 = vmatprep.subr.mxu0 0.0
    %337 = vmatpush1.msra.mxu0 0.0
    %338 = vmatprep.subr.mxu0 0.0
    %339 = vmatpush1.msra.mxu0 0.0
    %340 = vmatprep.subr.mxu0 0.0
    %341 = vmatpush1.msra.mxu0 0.0
    %342 = vmatprep.subr.mxu0 0.0
    %343 = vmatpush1.msra.mxu0 0.0
    %344 = vmatprep.subr.mxu0 0.0
    %345 = vmatpush1.msra.mxu0 0.0
    %346 = vmatprep.subr.mxu0 0.0
    %347 = vmatpush1.msra.mxu0 0.0
    %348 = vmatprep.subr.mxu0 0.0
    %349 = vmatpush1.msra.mxu0 0.0
    %350 = vmatprep.subr.mxu0 0.0
    %351 = vmatpush1.msra.mxu0 0.0
    %352 = vmatprep.subr.mxu0 0.0
    %353 = vmatpush1.msra.mxu0 0.0
    %354 = vmatprep.subr.mxu0 0.0
    %355 = vmatpush1.msra.mxu0 0.0
    %356 = vmatprep.subr.mxu0 0.0
    %357 = vmatpush1.msra.mxu0 0.0
    %358 = vmatprep.subr.mxu0 0.0
    %359 = vmatpush1.msra.mxu0 0.0
    %360 = vmatprep.subr.mxu0 0.0
    %361 = vmatpush1.msra.mxu0 0.0
    %362 = vmatprep.subr.mxu0 0.0
    %363 = vmatpush1.msra.mxu0 0.0
    %364 = vmatprep.subr.mxu0 0.0
    %365 = vmatpush1.msra.mxu0 0.0
    %366 = vmatprep.subr.mxu0 0.0
    %367 = vmatpush1.msra.mxu0 0.0
    %368 = vmatprep.subr.mxu0 0.0
    %369 = vmatpush1.msra.mxu0 0.0
    %370 = vmatprep.subr.mxu0 0.0
    %371 = vmatpush1.msra.mxu0 0.0
    %372 = vmatprep.subr.mxu0 0.0
    %373 = vmatpush1.msra.mxu0 0.0
    %374 = vmatprep.mubr.f32.mxu0 0.0
    %375 = vmatmul.mubr.f32.gmra.mrb[0].mxu0 %v308
    %v376 = vpop.f32.mrb[0].mxu0
    %v377 = vadd.f32 %v305, %v376
    %v378 = vpop.f32.mrb[0].mxu0
    %379 = vdwg.mxu0
    %v380 = vsel %vm123, 0.0, -20.723267
    %v381 = vadd.f32 %v377, %v380
    %382 = vmax.xlane.f32.xlu0 %v381
    %v383 = vpop.xlane.xlu0 %382
    %v384 = vsub.f32 %v381, %v383
    %v385 = vmul.f32 %v384, 1.442695
    %v386 = vpow.pop %v385
    %387 = vadd.xlane.f32.xlu0 %v386
    %v388 = vpop.xlane.xlu0 %387
    %v389 = vrcp.pop %v388
    %v390 = vmul.f32 %v386, %v389
    %vm391 = vcmask 72704
    %392 = vst.msk [vmem:[#allocation10] sm:$0xff] %vm391, %v390
    // Predicated region
    $region50: #{tpu_custom_call.1} parent=1 // pred_check
      _
    $region51: #{tpu_custom_call.1} parent=1 // pred_check_branch
      %394 = sbr.rel (0) target = $region53
    $region52: #{tpu_custom_call.1} parent=1 // pred_region
      %s396 = ssub.s32 128, 128
      %397 = vsyncadd [#allocation4], %s396
      %s399 = sshll.u32 [#allocation10], 4
      %s400 = int_to_ptr.vmem [resolvable:$true] %s399
      %402 = dma.vmem_to_hbm [thread:$0]  %s400, 128, %s8, [#allocation4]
    $region53: #{tpu_custom_call.1} parent=1 // pred_fallthru
      _
    // Predicated region
    $region54: #{tpu_custom_call.1} parent=1 // pred_check
      _
    $region55: #{tpu_custom_call.1} parent=1 // pred_check_branch
      %404 = sbr.rel (0) target = $region57
    $region56: #{tpu_custom_call.1} parent=1 // pred_region
      %405 = dma.done [#allocation4], 128
    $region57: #{tpu_custom_call.1} parent=1 // pred_fallthru
      _
    %406 = vsyncpa [#allocation3], 1
    %407 = vsyncpa [#allocation6], 1
    %408 = vsyncpa [#allocation9], 1
    %409 = vsyncpa [#allocation4], 1

</llo_original>
